<compile_context>
chip_gen: v6e
topology: v6e:2x2x1
jax: 0.10.0
libtpu: 0.0.40
codegen_flags: <defaults>
</compile_context>

<pallas_src>
import jax
import jax.numpy as jnp
from jax.experimental import pallas as pl
from jax.experimental.pallas import tpu as pltpu


def _round_up(x, m):
    return ((x + m - 1) // m) * m


def _prompt_assemble_kernel(prefix_ref, ctx_ref, suffix_ref, out_ref):
    # prefix_ref : (CB, 1,     D)   block of classes
    # ctx_ref    : (n_ctx,     D)   shared context (VMEM-resident; constant index_map)
    # suffix_ref : (CB, n_suf, D)   block of classes
    # out_ref    : (CB, seq,   D),  seq = 1 + n_ctx + n_suf
    cb = out_ref.shape[0]
    n_ctx, d = ctx_ref.shape
    # Three direct segment stores (no concatenate / full-slab temporary).
    # D is lane-dense (multiple of 128); the sublane misalignment at seq
    # offsets 1 and 1+n_ctx only costs shuffle work hidden under the HBM DMAs.
    out_ref[:, 0:1, :] = prefix_ref[...]
    out_ref[:, 1:1 + n_ctx, :] = jnp.broadcast_to(
        ctx_ref[...][None, :, :], (cb, n_ctx, d)).astype(out_ref.dtype)
    out_ref[:, 1 + n_ctx:, :] = suffix_ref[...]


def _vmem_budget_bytes():
    """Generation-aware (budget, scoped_limit, two_tensorcores)."""
    physical = None
    try:
        info = pltpu.get_tpu_info()
        physical = getattr(info, "vmem_capacity_bytes", None)
    except Exception:
        physical = None
    if not physical or physical <= 0:
        # Conservative fallback: assume the smallest per-core VMEM (v7x, 64 MiB).
        physical = 64 * 1024 * 1024
    # Heuristic: parts exposing <= 80 MiB per core are v7x-class (2 TCs/chip).
    two_tc = physical <= 80 * 1024 * 1024
    # ~5/8 of physical for the pipelined blocks; scoped limit at ~3/4 physical.
    budget = min(int(physical * 5 // 8), 96 * 1024 * 1024)
    limit = min(int(physical * 3 // 4), 112 * 1024 * 1024)
    limit = max(limit, budget + (2 * 1024 * 1024))
    return budget, limit, two_tc


def prompt_learner_forward(ctx, token_prefix, token_suffix, *,
                           class_block=None, vmem_budget_bytes=None):
    """prompts = concat([prefix, ctx broadcast over classes, suffix], dim=-2)."""
    n_cls = token_prefix.shape[0]
    n_ctx, ctx_dim = ctx.shape
    n_suf = token_suffix.shape[1]
    seq = 1 + n_ctx + n_suf
    dtype = token_prefix.dtype
    itemsize = jnp.dtype(dtype).itemsize

    budget, vmem_limit, two_tc = _vmem_budget_bytes()
    if vmem_budget_bytes is not None:
        budget = int(vmem_budget_bytes)
        vmem_limit = max(vmem_limit, budget + (2 * 1024 * 1024))

    # --- padded per-block VMEM accounting -----------------------------------
    # Sub-32-bit dtypes pack along sublanes: sublane multiple = 8 * (4/itemsize).
    pack = max(1, 4 // itemsize)
    sub = 8 * pack
    d_pad = _round_up(ctx_dim, 128)
    # prefix block pads its size-1 seq dim to a full sublane group; suffix/out
    # pad their seq dims to the sublane multiple; D pads to 128 lanes.
    per_class_padded = (sub + _round_up(n_suf, sub) + _round_up(seq, sub)) \
        * d_pad * itemsize
    ctx_bytes = 2 * _round_up(n_ctx, sub) * d_pad * itemsize      # resident, 2 bufs
    headroom = 1 * 1024 * 1024                                     # compiler scratch
    avail = max(0, budget - ctx_bytes - headroom)
    # Inputs and output are double-buffered by the pipeline -> factor 2.
    cb_max = max(1, avail // (2 * per_class_padded))
    if class_block is not None:
        cb_max = max(1, int(class_block))
    cb_max = min(cb_max, n_cls)

    # --- balanced step count -------------------------------------------------
    num_steps = pl.cdiv(n_cls, cb_max)
    if two_tc and n_cls >= 2:
        # Keep >= 2 (preferably even) steps so the "parallel" class axis can be
        # sharded across both TensorCores on v7x.
        num_steps = max(num_steps, 2)
        if (num_steps % 2) and (num_steps < n_cls):
            num_steps += 1
    num_steps = min(num_steps, n_cls)
    cb = int(pl.cdiv(n_cls, num_steps))
    grid = (pl.cdiv(n_cls, cb),)

    # Purely memory-bound: zero flops; bytes = read(prefix+ctx+suffix) + write(out).
    cost = pl.CostEstimate(
        flops=0,
        transcendentals=0,
        bytes_accessed=(n_cls * (1 + n_suf) + n_ctx + n_cls * seq)
        * ctx_dim * itemsize,
    )

    return pl.pallas_call(
        _prompt_assemble_kernel,
        out_shape=jax.ShapeDtypeStruct((n_cls, seq, ctx_dim), dtype),
        grid=grid,
        in_specs=[
            pl.BlockSpec((cb, 1, ctx_dim), lambda c: (c, 0, 0)),        # prefix
            pl.BlockSpec((n_ctx, ctx_dim), lambda c: (0, 0)),           # ctx (resident)
            pl.BlockSpec((cb, n_suf, ctx_dim), lambda c: (c, 0, 0)),    # suffix
        ],
        out_specs=pl.BlockSpec((cb, seq, ctx_dim), lambda c: (c, 0, 0)),
        compiler_params=pltpu.CompilerParams(
            dimension_semantics=("parallel",),
            vmem_limit_bytes=int(vmem_limit)),
        cost_estimate=cost,
    )(token_prefix, ctx, token_suffix)


if __name__ == "__main__":
    # Small shapes consistent with the module (real CLIP: n_ctx=16, D=512, seq=77).
    n_cls, n_ctx, ctx_dim = 16, 6, 128
    seq_total = 32
    n_suf = seq_total - 1 - n_ctx  # = 25

    key = jax.random.PRNGKey(0)
    k_ctx, k_pre, k_suf = jax.random.split(key, 3)

    # nn.init.normal_(ctx_vectors, std=0.02)
    ctx = (0.02 * jax.random.normal(k_ctx, (n_ctx, ctx_dim))).astype(jnp.float32)
    # token_prefix / token_suffix come from clip_model.token_embedding; here
    # deterministically synthesized (no checkpoint load).
    token_prefix = jax.random.normal(k_pre, (n_cls, 1, ctx_dim), dtype=jnp.float32)
    token_suffix = jax.random.normal(k_suf, (n_cls, n_suf, ctx_dim), dtype=jnp.float32)

    # class_block=8 -> multi-step grid: exercises the blocking + balancing path.
    prompts = prompt_learner_forward(ctx, token_prefix, token_suffix, class_block=8)
    prompts = jax.block_until_ready(prompts)

    # Also run with the automatic (generation-aware) block sizing.
    prompts_auto = jax.block_until_ready(
        prompt_learner_forward(ctx, token_prefix, token_suffix))

    # Reference: prompts = cat([prefix, ctx.expand(n_cls, ...), suffix], dim=-2)
    ref = jnp.concatenate(
        [token_prefix,
         jnp.broadcast_to(ctx[None], (n_cls, n_ctx, ctx_dim)),
         token_suffix], axis=-2)
    assert prompts.shape == (n_cls, seq_total, ctx_dim)
    assert jnp.allclose(prompts, ref), "mismatch vs reference concat"
    assert jnp.allclose(prompts_auto, ref), "mismatch vs reference concat (auto block)"

    print("KERNEL_OK")
</pallas_src>

<mosaic_0001>
module attributes {stable_mosaic.version = 11 : i64} {
  func.func @_prompt_assemble_kernel(%arg0: i32, %arg1: memref<8x1x128xf32, #tpu.memory_space<vmem>>, %arg2: memref<6x128xf32, #tpu.memory_space<vmem>>, %arg3: memref<8x25x128xf32, #tpu.memory_space<vmem>>, %arg4: memref<8x32x128xf32, #tpu.memory_space<vmem>>) attributes {dimension_semantics = [#tpu.dimension_semantics<parallel>], iteration_bounds = array<i64: 2>, scalar_prefetch = 0 : i64, scratch_operands = 0 : i64, tpu.core_type = #tpu.core_type<tc>, window_params = [{transform_indices = @transform_0, window_bounds = array<i64: 8, 1, 128>}, {pipeline_mode = #tpu.pipeline_mode<synchronous>, transform_indices = @transform_1, window_bounds = array<i64: 6, 128>}, {transform_indices = @transform_2, window_bounds = array<i64: 8, 25, 128>}, {transform_indices = @transform_3, window_bounds = array<i64: 8, 32, 128>}]} {
    %c0 = arith.constant 0 : index
    %c0_0 = arith.constant 0 : index
    %c0_1 = arith.constant 0 : index
    %0 = vector.load %arg1[%c0, %c0_0, %c0_1] : memref<8x1x128xf32, #tpu.memory_space<vmem>>, vector<8x1x128xf32>
    %c0_2 = arith.constant 0 : index
    %c0_3 = arith.constant 0 : index
    %c0_4 = arith.constant 0 : index
    %1 = vector.load %arg4[%c0_2, %c0_3, %c0_4] : memref<8x32x128xf32, #tpu.memory_space<vmem>>, vector<8x1x128xf32>
    tpu.vector_store %arg4[%c0_2, %c0_3, %c0_4], %0 {strides = array<i32>} : memref<8x32x128xf32, #tpu.memory_space<vmem>>, vector<8x1x128xf32>,
    %c0_5 = arith.constant 0 : index
    %c0_6 = arith.constant 0 : index
    %2 = vector.load %arg2[%c0_5, %c0_6] : memref<6x128xf32, #tpu.memory_space<vmem>>, vector<6x128xf32>
    %3 = vector.shape_cast %2 : vector<6x128xf32> to vector<1x6x128xf32>
    %4 = vector.shape_cast %3 : vector<1x6x128xf32> to vector<1x6x128xf32>
    %5 = vector.broadcast %4 : vector<1x6x128xf32> to vector<8x6x128xf32>
    %c0_7 = arith.constant 0 : index
    %c1 = arith.constant 1 : index
    %c0_8 = arith.constant 0 : index
    %6 = vector.load %arg4[%c0_7, %c1, %c0_8] : memref<8x32x128xf32, #tpu.memory_space<vmem>>, vector<8x6x128xf32>
    tpu.vector_store %arg4[%c0_7, %c1, %c0_8], %5 {strides = array<i32>} : memref<8x32x128xf32, #tpu.memory_space<vmem>>, vector<8x6x128xf32>,
    %c0_9 = arith.constant 0 : index
    %c0_10 = arith.constant 0 : index
    %c0_11 = arith.constant 0 : index
    %7 = vector.load %arg3[%c0_9, %c0_10, %c0_11] : memref<8x25x128xf32, #tpu.memory_space<vmem>>, vector<8x25x128xf32>
    %c0_12 = arith.constant 0 : index
    %c7 = arith.constant 7 : index
    %c0_13 = arith.constant 0 : index
    %8 = vector.load %arg4[%c0_12, %c7, %c0_13] : memref<8x32x128xf32, #tpu.memory_space<vmem>>, vector<8x25x128xf32>
    tpu.vector_store %arg4[%c0_12, %c7, %c0_13], %7 {strides = array<i32>} : memref<8x32x128xf32, #tpu.memory_space<vmem>>, vector<8x25x128xf32>,
    return
  }
  func.func @transform_0(%arg0: i32) -> (i32, i32, i32) {
    %c0_i32 = arith.constant 0 : i32
    %c0_i32_0 = arith.constant 0 : i32
    %c0_i32_1 = arith.constant 0 : i32
    return %arg0, %c0_i32, %c0_i32_0 : i32, i32, i32
  }
  func.func @transform_1(%arg0: i32) -> (i32, i32) {
    %c0_i32 = arith.constant 0 : i32
    %c0_i32_0 = arith.constant 0 : i32
    %c0_i32_1 = arith.constant 0 : i32
    return %c0_i32, %c0_i32_0 : i32, i32
  }
  func.func @transform_2(%arg0: i32) -> (i32, i32, i32) {
    %c0_i32 = arith.constant 0 : i32
    %c0_i32_0 = arith.constant 0 : i32
    %c0_i32_1 = arith.constant 0 : i32
    return %arg0, %c0_i32, %c0_i32_0 : i32, i32, i32
  }
  func.func @transform_3(%arg0: i32) -> (i32, i32, i32) {
    %c0_i32 = arith.constant 0 : i32
    %c0_i32_0 = arith.constant 0 : i32
    %c0_i32_1 = arith.constant 0 : i32
    return %arg0, %c0_i32, %c0_i32_0 : i32, i32, i32
  }
}

</mosaic_0001>

<llo_original>
// kernel: tpu_custom_call.1
$region0: #{tpu_custom_call.1}
  #allocation0 [shape = 'u32[]', space=smem, size = 0x4, offset = 0x4, fixed_abs, tag = 'smem constant byte address 0x4 - core index']
  #allocation1 [shape = 'u32[144,128]{1,0:T(1,128)}', space=vmem, size = 0x12000, scoped, tag = 'internal scratch']
  %s0 = inlined_call_operand.vmem [shape: f32[16,1,128], index: 0, kind: input, shape index: {}]
  %s1 = inlined_call_operand.vmem [shape: f32[6,128], index: 1, kind: input, shape index: {}]
  %s2 = inlined_call_operand.vmem [shape: f32[16,25,128], index: 2, kind: input, shape index: {}]
  %s3 = inlined_call_operand.hbm [shape: f32[16,32,128], index: 3, kind: output, shape index: {}]
  %s4 = sld [smem:[#allocation0]]
  $region45: #{tpu_custom_call.1} parent=0
    _
  %s6 = ssub.s32 1, %s4
  %s7 = scalar_select 0, %s6, %s4
  $region1: #{tpu_custom_call.1} parent=0
    #allocation2 [shape = 'u8[262144]{0}', space=vmem, size = 0x40000, scoped, tag = 'output window, operand 0']
    #allocation3 [shape = 's32[2]{0}', space=sflag, size = 0x8, scoped, tag = 'scoped memory for tpu_custom_call.1']
    %8 = vsyncpa [#allocation3], 0
    %s9 = scalar_lea.sflag [#allocation3], 1
    %10 = vsyncpa %s9, 0
    loop: start=0, step=1, limit=4
    $region2: #{tpu_custom_call.1} parent=1 // loop_pre_header
      _
    $region3: #{tpu_custom_call.1} parent=1 // loop_header
      %s12 = sphi 0, %s16
      %p13 = scmp.ge.s32.totalorder %s12, 4
      %s22 = sphi 0, %s24
      %s25 = sphi 0, %s22
      %s26 = sphi 0, %s25
      %s42 = sphi 0, %s26
      %s46 = sphi 0, %s46
      %s48 = sphi 0, %s46
      %s49 = sphi 0, %s48
      %s63 = sphi 0, %s49
      %s69 = sphi 0, %s71
      %s72 = sphi 0, %s69
      %s73 = sphi 0, %s72
      %s89 = sphi 0, %s73
      %s95 = sphi 0, %s97
      %s98 = sphi 0, %s95
      %s99 = sphi 0, %s98
      %s115 = sphi 0, %s99
    $region4: #{tpu_custom_call.1} parent=1 // loop_header_branch
      %15 = sbr.rel (%p13) target = $region8
    $region5: #{tpu_custom_call.1} parent=1 // loop_body
      %s17 = ssub.s32 %s12, 1
      %s18 = ssub.s32 %s12, 2
      %s19 = sadd.s32 %s12, 1
      %s20 = ssub.s32 %s12, %s19
      %p21 = scmp.eq.s32.totalorder %s20, 0
      %s23 = sadd.s32 %s22, 1
      %s24 = scalar_select %p21, %s22, %s23
      %p27 = pneg %p21
      %p28 = scmp.eq.s32.totalorder %s12, 1
      %p29 = por %p27, %p28
      %p30 = scmp.ne.s32.totalorder %s22, %s25
      %p31 = scmp.eq.s32.totalorder %s12, 0
      %p32 = por %p30, %p31
      %p33 = scmp.ne.s32.totalorder %s22, %s25
      %p34 = scmp.eq.s32.totalorder %s17, 1
      %p35 = por %p33, %p34
      %p36 = scmp.ne.s32.totalorder %s25, %s26
      %p37 = scmp.eq.s32.totalorder %s17, 0
      %p38 = por %p36, %p37
      %p39 = scmp.ne.s32.totalorder %s25, %s26
      %p40 = scmp.eq.s32.totalorder %s18, 1
      %p41 = por %p39, %p40
      %p43 = scmp.ne.s32.totalorder %s26, %s42
      %p44 = scmp.eq.s32.totalorder %s18, 0
      %p45 = por %p43, %p44
      %s47 = sadd.s32 %s46, 1
      %p50 = scmp.eq.s32.totalorder %s12, 1
      %p51 = scmp.ne.s32.totalorder %s46, %s48
      %p52 = scmp.eq.s32.totalorder %s12, 0
      %p53 = por %p51, %p52
      %p54 = scmp.ne.s32.totalorder %s46, %s48
      %p55 = scmp.eq.s32.totalorder %s17, 1
      %p56 = por %p54, %p55
      %p57 = scmp.ne.s32.totalorder %s48, %s49
      %p58 = scmp.eq.s32.totalorder %s17, 0
      %p59 = por %p57, %p58
      %p60 = scmp.ne.s32.totalorder %s48, %s49
      %p61 = scmp.eq.s32.totalorder %s18, 1
      %p62 = por %p60, %p61
      %p64 = scmp.ne.s32.totalorder %s49, %s63
      %p65 = scmp.eq.s32.totalorder %s18, 0
      %p66 = por %p64, %p65
      %s67 = ssub.s32 %s12, %s19
      %p68 = scmp.eq.s32.totalorder %s67, 0
      %s70 = sadd.s32 %s69, 1
      %s71 = scalar_select %p68, %s69, %s70
      %p74 = pneg %p68
      %p75 = scmp.eq.s32.totalorder %s12, 1
      %p76 = por %p74, %p75
      %p77 = scmp.ne.s32.totalorder %s69, %s72
      %p78 = scmp.eq.s32.totalorder %s12, 0
      %p79 = por %p77, %p78
      %p80 = scmp.ne.s32.totalorder %s69, %s72
      %p81 = scmp.eq.s32.totalorder %s17, 1
      %p82 = por %p80, %p81
      %p83 = scmp.ne.s32.totalorder %s72, %s73
      %p84 = scmp.eq.s32.totalorder %s17, 0
      %p85 = por %p83, %p84
      %p86 = scmp.ne.s32.totalorder %s72, %s73
      %p87 = scmp.eq.s32.totalorder %s18, 1
      %p88 = por %p86, %p87
      %p90 = scmp.ne.s32.totalorder %s73, %s89
      %p91 = scmp.eq.s32.totalorder %s18, 0
      %p92 = por %p90, %p91
      %s93 = ssub.s32 %s12, %s19
      %p94 = scmp.eq.s32.totalorder %s93, 0
      %s96 = sadd.s32 %s95, 1
      %s97 = scalar_select %p94, %s95, %s96
      %p100 = pneg %p94
      %p101 = scmp.eq.s32.totalorder %s12, 1
      %p102 = por %p100, %p101
      %p103 = scmp.ne.s32.totalorder %s95, %s98
      %p104 = scmp.eq.s32.totalorder %s12, 0
      %p105 = por %p103, %p104
      %p106 = scmp.ne.s32.totalorder %s95, %s98
      %p107 = scmp.eq.s32.totalorder %s17, 1
      %p108 = por %p106, %p107
      %p109 = scmp.ne.s32.totalorder %s98, %s99
      %p110 = scmp.eq.s32.totalorder %s17, 0
      %p111 = por %p109, %p110
      %p112 = scmp.ne.s32.totalorder %s98, %s99
      %p113 = scmp.eq.s32.totalorder %s18, 1
      %p114 = por %p112, %p113
      %p116 = scmp.ne.s32.totalorder %s99, %s115
      %p117 = scmp.eq.s32.totalorder %s18, 0
      %p118 = por %p116, %p117
      %p119 = scmp.le.s32.totalorder 1, %s12
      %p120 = scmp.lt.s32.totalorder %s12, 3
      %p121 = pnand %p119, %p120
      %p122 = pneg %p121
      // Predicated region
      $region9: #{tpu_custom_call.1} parent=5 // pred_check
        _
      $region10: #{tpu_custom_call.1} parent=5 // pred_check_branch
        %124 = sbr.rel (%p121) target = $region12
      $region11: #{tpu_custom_call.1} parent=5 // pred_region
        %s125 = ssub.s32 %s12, 1
        // Predicated region
        $region13: #{tpu_custom_call.1} parent=11 // pred_check
          %p126 = pneg %p59
        $region14: #{tpu_custom_call.1} parent=11 // pred_check_branch
          %128 = sbr.rel (%p126) target = $region16
        $region15: #{tpu_custom_call.1} parent=11 // pred_region
          _
        $region16: #{tpu_custom_call.1} parent=11 // pred_fallthru
          _
      $region12: #{tpu_custom_call.1} parent=5 // pred_fallthru
        _
      %p129 = scmp.lt.s32.totalorder %s12, 2
      // Predicated region
      $region17: #{tpu_custom_call.1} parent=5 // pred_check
        %p130 = pneg %p129
      $region18: #{tpu_custom_call.1} parent=5 // pred_check_branch
        %132 = sbr.rel (%p130) target = $region20
      $region19: #{tpu_custom_call.1} parent=5 // pred_region
        // Predicated region
        $region21: #{tpu_custom_call.1} parent=19 // pred_check
          %p133 = pneg %p32
        $region22: #{tpu_custom_call.1} parent=19 // pred_check_branch
          %135 = sbr.rel (%p133) target = $region24
        $region23: #{tpu_custom_call.1} parent=19 // pred_region
          %s136 = smul.u32 8, %s12
          %p137 = scmp.lt.s32.totalorder %s136, 15
          %s138 = scalar_select %p137, %s136, 15
          %s139 = scalar_lea.vmem %s0, %s138
          %s140 = smul.u32 8, %s12
        $region24: #{tpu_custom_call.1} parent=19 // pred_fallthru
          _
        // Predicated region
        $region25: #{tpu_custom_call.1} parent=19 // pred_check
          %p141 = pneg %p79
        $region26: #{tpu_custom_call.1} parent=19 // pred_check_branch
          %143 = sbr.rel (%p141) target = $region28
        $region27: #{tpu_custom_call.1} parent=19 // pred_region
          %s144 = smul.u32 8, %s12
          %p145 = scmp.lt.s32.totalorder %s144, 15
          %s146 = scalar_select %p145, %s144, 15
          %s147 = smul.addr %s146, 4
          %s148 = smul.addr %s147, 8
          %s149 = scalar_lea.vmem %s2, %s148
          %s150 = smul.u32 8, %s12
        $region28: #{tpu_custom_call.1} parent=19 // pred_fallthru
          _
      $region20: #{tpu_custom_call.1} parent=5 // pred_fallthru
        _
      %p151 = scmp.le.s32.totalorder 1, %s12
      %p152 = scmp.lt.s32.totalorder %s12, 3
      %p153 = pnand %p151, %p152
      %p154 = pneg %p153
      // Predicated region
      $region29: #{tpu_custom_call.1} parent=5 // pred_check
        _
      $region30: #{tpu_custom_call.1} parent=5 // pred_check_branch
        %156 = sbr.rel (%p153) target = $region32
      $region31: #{tpu_custom_call.1} parent=5 // pred_region
        %s157 = ssub.s32 %s12, 1
        %s158 = smul.u32 8, %s17
        %p159 = scmp.lt.s32.totalorder %s158, 15
        %s160 = scalar_select %p159, %s158, 15
        %s161 = scalar_lea.vmem %s0, %s160
        %p162 = pneg %p38
        %p163 = pneg %p35
        %p164 = pneg %p59
        %p165 = pneg %p56
        %s166 = smul.u32 8, %s17
        %p167 = scmp.lt.s32.totalorder %s166, 15
        %s168 = scalar_select %p167, %s166, 15
        %s169 = smul.addr %s168, 4
        %s170 = smul.addr %s169, 8
        %s171 = scalar_lea.vmem %s2, %s170
        %p172 = pneg %p85
        %p173 = pneg %p82
        %p174 = pneg %p111
        %p175 = pneg %p108
        %s176 = sand.u32 %s98, 1
        %s177 = scalar_lea.sflag [#allocation3], %s176
        %s178 = sand.u32 %s98, 1
        %s179 = smul.addr %s178, 256
        %s180 = scalar_lea.vmem [#allocation2], %s179
        %s181 = smul.u32 8, %s17
        %p182 = scmp.lt.s32.totalorder %s181, 15
        %s183 = scalar_select %p182, %s181, 15
        %s184 = scalar_lea.vmem %s0, %s183
        %s185 = smul.u32 8, %s17
        %s186 = smul.u32 8, %s17
        %p187 = scmp.lt.s32.totalorder %s186, 15
        %s188 = scalar_select %p187, %s186, 15
        %s189 = smul.addr %s188, 4
        %s190 = smul.addr %s189, 8
        %s191 = scalar_lea.vmem %s2, %s190
        %s192 = smul.u32 8, %s17
        %s193 = smul.u32 8, %s17
        %v194 = vld [vmem:[%s184] sm:$0x1]
        %v195 = vld [vmem:[%s184 + $0x1] sm:$0x1]
        %v196 = vld [vmem:[%s184 + $0x2] sm:$0x1]
        %v197 = vld [vmem:[%s184 + $0x3] sm:$0x1]
        %v198 = vld [vmem:[%s184 + $0x4] sm:$0x1]
        %v199 = vld [vmem:[%s184 + $0x5] sm:$0x1]
        %v200 = vld [vmem:[%s184 + $0x6] sm:$0x1]
        %v201 = vld [vmem:[%s184 + $0x7] sm:$0x1]
        %202 = vst [vmem:[%s180] sm:$0x1] %v194
        %203 = vst [vmem:[%s180 + $0x20] sm:$0x1] %v195
        %204 = vst [vmem:[%s180 + $0x40] sm:$0x1] %v196
        %205 = vst [vmem:[%s180 + $0x60] sm:$0x1] %v197
        %206 = vst [vmem:[%s180 + $0x80] sm:$0x1] %v198
        %207 = vst [vmem:[%s180 + $0xa0] sm:$0x1] %v199
        %208 = vst [vmem:[%s180 + $0xc0] sm:$0x1] %v200
        %209 = vst [vmem:[%s180 + $0xe0] sm:$0x1] %v201
        %v210 = vld [vmem:[%s1] sm:$0x3f]
        %211 = vst [vmem:[%s180 + $0x1] sm:$0x3f] %v210
        %212 = vst [vmem:[%s180 + $0x21] sm:$0x3f] %v210
        %213 = vst [vmem:[%s180 + $0x41] sm:$0x3f] %v210
        %214 = vst [vmem:[%s180 + $0x61] sm:$0x3f] %v210
        %215 = vst [vmem:[%s180 + $0x81] sm:$0x3f] %v210
        %216 = vst [vmem:[%s180 + $0xa1] sm:$0x3f] %v210
        %217 = vst [vmem:[%s180 + $0xc1] sm:$0x3f] %v210
        %218 = vst [vmem:[%s180 + $0xe1] sm:$0x3f] %v210
        %v219 = vld [vmem:[%s191] sm:$0xff]
        %v220 = vld [vmem:[%s191 + $0x8] sm:$0xff]
        %v221 = vld [vmem:[%s191 + $0x10] sm:$0xff]
        %v222 = vld [vmem:[%s191 + $0x18] sm:$0x1]
        %v223 = vld [vmem:[%s191 + $0x20] sm:$0xff]
        %v224 = vld [vmem:[%s191 + $0x28] sm:$0xff]
        %v225 = vld [vmem:[%s191 + $0x30] sm:$0xff]
        %v226 = vld [vmem:[%s191 + $0x38] sm:$0x1]
        %v227 = vld [vmem:[%s191 + $0x40] sm:$0xff]
        %v228 = vld [vmem:[%s191 + $0x48] sm:$0xff]
        %v229 = vld [vmem:[%s191 + $0x50] sm:$0xff]
        %v230 = vld [vmem:[%s191 + $0x58] sm:$0x1]
        %v231 = vld [vmem:[%s191 + $0x60] sm:$0xff]
        %v232 = vld [vmem:[%s191 + $0x68] sm:$0xff]
        %v233 = vld [vmem:[%s191 + $0x70] sm:$0xff]
        %v234 = vld [vmem:[%s191 + $0x78] sm:$0x1]
        %v235 = vld [vmem:[%s191 + $0x80] sm:$0xff]
        %v236 = vld [vmem:[%s191 + $0x88] sm:$0xff]
        %v237 = vld [vmem:[%s191 + $0x90] sm:$0xff]
        %v238 = vld [vmem:[%s191 + $0x98] sm:$0x1]
        %v239 = vld [vmem:[%s191 + $0xa0] sm:$0xff]
        %v240 = vld [vmem:[%s191 + $0xa8] sm:$0xff]
        %v241 = vld [vmem:[%s191 + $0xb0] sm:$0xff]
        %v242 = vld [vmem:[%s191 + $0xb8] sm:$0x1]
        %v243 = vld [vmem:[%s191 + $0xc0] sm:$0xff]
        %v244 = vld [vmem:[%s191 + $0xc8] sm:$0xff]
        %v245 = vld [vmem:[%s191 + $0xd0] sm:$0xff]
        %v246 = vld [vmem:[%s191 + $0xd8] sm:$0x1]
        %v247 = vld [vmem:[%s191 + $0xe0] sm:$0xff]
        %v248 = vld [vmem:[%s191 + $0xe8] sm:$0xff]
        %v249 = vld [vmem:[%s191 + $0xf0] sm:$0xff]
        %v250 = vld [vmem:[%s191 + $0xf8] sm:$0x1]
        %251 = vst [vmem:[%s180 + $0x7] sm:$0xff] %v219
        %252 = vst [vmem:[%s180 + $0xf] sm:$0xff] %v220
        %253 = vst [vmem:[%s180 + $0x17] sm:$0xff] %v221
        %254 = vst [vmem:[%s180 + $0x1f] sm:$0x1] %v222
        %255 = vst [vmem:[%s180 + $0x27] sm:$0xff] %v223
        %256 = vst [vmem:[%s180 + $0x2f] sm:$0xff] %v224
        %257 = vst [vmem:[%s180 + $0x37] sm:$0xff] %v225
        %258 = vst [vmem:[%s180 + $0x3f] sm:$0x1] %v226
        %259 = vst [vmem:[%s180 + $0x47] sm:$0xff] %v227
        %260 = vst [vmem:[%s180 + $0x4f] sm:$0xff] %v228
        %261 = vst [vmem:[%s180 + $0x57] sm:$0xff] %v229
        %262 = vst [vmem:[%s180 + $0x5f] sm:$0x1] %v230
        %263 = vst [vmem:[%s180 + $0x67] sm:$0xff] %v231
        %264 = vst [vmem:[%s180 + $0x6f] sm:$0xff] %v232
        %265 = vst [vmem:[%s180 + $0x77] sm:$0xff] %v233
        %266 = vst [vmem:[%s180 + $0x7f] sm:$0x1] %v234
        %267 = vst [vmem:[%s180 + $0x87] sm:$0xff] %v235
        %268 = vst [vmem:[%s180 + $0x8f] sm:$0xff] %v236
        %269 = vst [vmem:[%s180 + $0x97] sm:$0xff] %v237
        %270 = vst [vmem:[%s180 + $0x9f] sm:$0x1] %v238
        %271 = vst [vmem:[%s180 + $0xa7] sm:$0xff] %v239
        %272 = vst [vmem:[%s180 + $0xaf] sm:$0xff] %v240
        %273 = vst [vmem:[%s180 + $0xb7] sm:$0xff] %v241
        %274 = vst [vmem:[%s180 + $0xbf] sm:$0x1] %v242
        %275 = vst [vmem:[%s180 + $0xc7] sm:$0xff] %v243
        %276 = vst [vmem:[%s180 + $0xcf] sm:$0xff] %v244
        %277 = vst [vmem:[%s180 + $0xd7] sm:$0xff] %v245
        %278 = vst [vmem:[%s180 + $0xdf] sm:$0x1] %v246
        %279 = vst [vmem:[%s180 + $0xe7] sm:$0xff] %v247
        %280 = vst [vmem:[%s180 + $0xef] sm:$0xff] %v248
        %281 = vst [vmem:[%s180 + $0xf7] sm:$0xff] %v249
        %282 = vst [vmem:[%s180 + $0xff] sm:$0x1] %v250
        %s283 = sand.u32 %s98, 1
        %s284 = scalar_lea.sflag [#allocation3], %s283
        %s285 = sand.u32 %s98, 1
        %s286 = smul.addr %s285, 256
        %s287 = scalar_lea.vmem [#allocation2], %s286
        // Predicated region
        $region33: #{tpu_custom_call.1} parent=31 // pred_check
          %p288 = pneg %p108
        $region34: #{tpu_custom_call.1} parent=31 // pred_check_branch
          %290 = sbr.rel (%p288) target = $region36
        $region35: #{tpu_custom_call.1} parent=31 // pred_region
          %s291 = smul.u32 8, %s17
          %s293 = ssub.s32 4096, 4096
          %294 = vsyncadd %s284, %s293
          %s295 = smul.addr %s291, 4
          %s296 = smul.addr %s295, 128
          %s297 = scalar_lea.hbm %s3, %s296
          %s298 = sshll.u32 %s287, 4
          %s299 = int_to_ptr.vmem [resolvable:$true] %s298
          %304 = dma.vmem_to_hbm [thread:$0]  %s299, 4096, %s297, %s284, 128, 128, 8
        $region36: #{tpu_custom_call.1} parent=31 // pred_fallthru
          _
      $region32: #{tpu_custom_call.1} parent=5 // pred_fallthru
        _
      %p305 = scmp.le.s32.totalorder 2, %s12
      // Predicated region
      $region37: #{tpu_custom_call.1} parent=5 // pred_check
        %p306 = pneg %p305
      $region38: #{tpu_custom_call.1} parent=5 // pred_check_branch
        %308 = sbr.rel (%p306) target = $region40
      $region39: #{tpu_custom_call.1} parent=5 // pred_region
        %s309 = ssub.s32 %s12, 2
        // Predicated region
        $region41: #{tpu_custom_call.1} parent=39 // pred_check
          %p310 = pneg %p114
        $region42: #{tpu_custom_call.1} parent=39 // pred_check_branch
          %312 = sbr.rel (%p310) target = $region44
        $region43: #{tpu_custom_call.1} parent=39 // pred_region
          %s313 = sand.u32 %s99, 1
          %s314 = scalar_lea.sflag [#allocation3], %s313
          %s315 = sand.u32 %s99, 1
          %s316 = smul.addr %s315, 256
          %s317 = scalar_lea.vmem [#allocation2], %s316
          %318 = dma.done %s314, 4096
        $region44: #{tpu_custom_call.1} parent=39 // pred_fallthru
          _
      $region40: #{tpu_custom_call.1} parent=5 // pred_fallthru
        _
    $region6: #{tpu_custom_call.1} parent=1 // loop_footer
      %s16 = sadd.s32 1, %s12
    $region7: #{tpu_custom_call.1} parent=1 // loop_footer_branch
      %11 = sbr.rel target = $region3
    $region8: #{tpu_custom_call.1} parent=1 // loop_exit
      _
    %319 = vsyncpa [#allocation3], 1
    %s320 = scalar_lea.sflag [#allocation3], 1
    %321 = vsyncpa %s320, 1

</llo_original>
